<compile_context>
chip_gen: v7x
topology: tpu7x:2x2x1
jax: 0.10.0
libtpu: 0.0.40
codegen_flags: <defaults>
</compile_context>

<pallas_src>
import functools

import jax
import jax.numpy as jnp
import numpy as np
from jax import lax
from jax.experimental import pallas as pl
from jax.experimental.pallas import tpu as pltpu


def _round_up(x, m):
    return ((x + m - 1) // m) * m


def _miou_stats_kernel(x_ref, lab_ref, out_ref, *, hw, n_classes, tile, chunk,
                       mask_needed, unroll):
    """Accumulates per-(image, class) intersection & union.

    x_ref:   (C, tile)        logits tile (native dtype), classes on sublanes
    lab_ref: (1, tile)        int32 labels tile
    out_ref: (1, 1, 2C, chunk) f32 resident accumulator (is also the output):
             rows [0:C)  = per-lane partial intersection sums
             rows [C:2C) = per-lane partial union sums
    """
    C = n_classes
    split = pl.program_id(0)
    i = pl.program_id(2)                 # pixel-tile index within this split
    tiles_per_split = pl.num_programs(2)

    @pl.when(i == 0)
    def _init():
        out_ref[...] = jnp.zeros_like(out_ref)

    # Logical pixel offset of this tile (index maps clamp the DMA in-bounds;
    # overflow / ragged lanes are masked below via this logical index).
    base = (split * tiles_per_split + i) * tile

    def body(j, carry):
        off = pl.multiple_of(j * chunk, chunk)                    # 128-aligned
        x = x_ref[:, pl.ds(off, chunk)].astype(jnp.float32)       # (C, chunk)
        lab = lab_ref[:, pl.ds(off, chunk)]                       # (1, chunk)

        if mask_needed:
            pidx = base + off + lax.broadcasted_iota(jnp.int32, (1, chunk), 1)
            valid = pidx < hw
            x = jnp.where(valid, x, 0.0)   # keep exp finite on padded lanes

        # Channel softmax: classes sit on sublanes -> cheap cross-sublane
        # reduce; divide via the EUP reciprocal (approx=False for accuracy).
        m = jnp.max(x, axis=0, keepdims=True)                     # (1, chunk)
        e = jnp.exp(x - m)                                        # (C, chunk)
        denom = jnp.sum(e, axis=0, keepdims=True)
        p = e * pl.reciprocal(denom, approx=False)

        # Rebuild the one-hot target in-VMEM from the integer labels.
        cls = lax.broadcasted_iota(jnp.int32, (C, chunk), 0)
        t = (cls == lab).astype(jnp.float32)                      # (C, chunk)

        if mask_needed:
            p = jnp.where(valid, p, 0.0)
            t = jnp.where(valid, t, 0.0)

        inter = p * t
        union = p + t - inter

        out_ref[0, 0, 0:C, :] += inter
        out_ref[0, 0, C:2 * C, :] += union
        return carry

    lax.fori_loop(0, tile // chunk, body, 0, unroll=unroll)


@functools.partial(jax.jit, static_argnames=("tile_p",))
def miou_loss_from_labels(inputs, labels, tile_p=32768):
    """Soft mean-IoU loss; `labels` are integer class ids of shape (N, H, W)."""
    N, C, H, W = inputs.shape
    HW = H * W

    x = inputs.reshape(N, C, HW)                  # no-copy reshape, native dtype
    lab = labels.reshape(N, 1, HW).astype(jnp.int32)
    x_bytes = inputs.dtype.itemsize

    # ---- tile / chunk selection --------------------------------------------
    # Lane-aligned pixel tile, clamped to the image size and to a VMEM budget
    # that is safe on every generation (v7x: 64 MiB VMEM): the double-buffered
    # inputs (logits + int32 labels) must stay under ~16 MiB.
    budget = 16 * 1024 * 1024
    per_lane = 2 * (C * x_bytes + 4)              # 2 pipeline buffers per input
    max_tile = max(128, (budget // per_lane) // 128 * 128)
    tile = min(_round_up(tile_p, 128), _round_up(HW, 128), max_tile)
    chunk = min(1024 if C <= 8 else 512, tile)    # lane-chunk streamed per step
    tile = _round_up(tile, chunk)

    num_tiles = pl.cdiv(HW, tile)
    # Split the pixel-tile (reduction) axis in two "parallel" groups so v7x's
    # two TensorCores have work even when N == 1; neutral on v5e/v6e.
    n_split = 2 if num_tiles >= 2 else 1
    tiles_per_split = pl.cdiv(num_tiles, n_split)
    mask_needed = (n_split * tiles_per_split * tile) != HW
    num_chunks = tile // chunk
    unroll = num_chunks <= 32                     # full unroll only when short

    kernel = functools.partial(
        _miou_stats_kernel, hw=HW, n_classes=C, tile=tile, chunk=chunk,
        mask_needed=mask_needed, unroll=unroll)

    def in_map(s, n, i):
        # Clamp so overflow iterations of the split axis never DMA out of
        # bounds; their contributions are masked to zero in-kernel.
        return (n, 0, jnp.minimum(s * tiles_per_split + i, num_tiles - 1))

    # Actual VMEM footprint (double-buffered inputs + resident output block)
    # plus headroom for in-kernel temporaries.
    vmem_bytes = (2 * tile * (C * x_bytes + 4)
                  + 2 * (2 * C) * chunk * 4
                  + (4 << 20))
    vmem_bytes = int(min(max(vmem_bytes, 16 << 20), 40 << 20))

    stats = pl.pallas_call(
        kernel,
        out_shape=jax.ShapeDtypeStruct((n_split, N, 2 * C, chunk), jnp.float32),
        grid_spec=pltpu.PrefetchScalarGridSpec(
            num_scalar_prefetch=0,
            grid=(n_split, N, tiles_per_split),
            in_specs=[
                pl.BlockSpec((pl.Squeezed(), C, tile), in_map),
                pl.BlockSpec((pl.Squeezed(), 1, tile), in_map),
            ],
            out_specs=pl.BlockSpec((1, 1, 2 * C, chunk),
                                   lambda s, n, i: (s, n, 0, 0)),
        ),
        compiler_params=pltpu.CompilerParams(
            dimension_semantics=("parallel", "parallel", "arbitrary"),
            vmem_limit_bytes=vmem_bytes,
        ),
    )(x, lab)

    totals = stats.sum(axis=(0, 3))               # fold splits + lanes -> (N, 2C)
    inter = totals[:, :C]
    union = totals[:, C:]
    return 1.0 - jnp.mean(inter / union)


@functools.partial(jax.jit, static_argnames=("tile_p",))
def miou_loss(inputs, target_onehot, tile_p=32768):
    """Matches `_mIoULoss.forward(inputs, target_oneHot)` for hard one-hot targets.

    The one-hot is collapsed to int32 labels so the kernel streams HW*4 target
    bytes per image instead of C*HW*4.  Callers that already hold integer
    labels should call `miou_loss_from_labels` directly (skips this argmax).
    """
    labels = jnp.argmax(target_onehot, axis=1).astype(jnp.int32)
    return miou_loss_from_labels(inputs, labels, tile_p=tile_p)


def _reference(inputs, target_onehot):
    """Pure-JAX (float32) mirror of the PyTorch forward."""
    N, C, H, W = inputs.shape
    probas = jax.nn.softmax(inputs.astype(jnp.float32), axis=1)
    t = target_onehot.astype(jnp.float32)
    inter = (probas * t).reshape(N, C, -1).sum(axis=2)
    union = (probas + t - probas * t).reshape(N, C, -1).sum(axis=2)
    return 1.0 - jnp.mean(inter / union)


if __name__ == "__main__":
    key = jax.random.PRNGKey(0)
    k1, k2 = jax.random.split(key, 2)

    N, C, H, W = 2, 4, 16, 16
    logits = jax.random.normal(k1, (N, C, H, W), dtype=jnp.float32)
    labels = jax.random.randint(k2, (N, H, W), 0, C, dtype=jnp.int32)
    target_onehot = jax.nn.one_hot(labels, C, axis=1, dtype=jnp.float32)  # (N,C,H,W)

    loss = miou_loss(logits, target_onehot)
    jax.block_until_ready(loss)

    ref = _reference(logits, target_onehot)
    np.testing.assert_allclose(np.asarray(loss), np.asarray(ref), rtol=1e-5, atol=1e-5)

    print("KERNEL_OK")
</pallas_src>

<mosaic_0001>
module attributes {stable_mosaic.version = 11 : i64} {
  func.func @_miou_stats_kernel(%arg0: i32, %arg1: i32, %arg2: i32, %arg3: memref<1x4x256xf32, #tpu.memory_space<vmem>>, %arg4: memref<1x1x256xi32, #tpu.memory_space<vmem>>, %arg5: memref<1x1x8x256xf32, #tpu.memory_space<vmem>>) attributes {dimension_semantics = [#tpu.dimension_semantics<parallel>, #tpu.dimension_semantics<parallel>, #tpu.dimension_semantics<arbitrary>], iteration_bounds = array<i64: 1, 2, 1>, scalar_prefetch = 0 : i64, scratch_operands = 0 : i64, tpu.core_type = #tpu.core_type<tc>, window_params = [{transform_indices = @transform_0, window_bounds = array<i64: 1, 4, 256>}, {transform_indices = @transform_1, window_bounds = array<i64: 1, 1, 256>}, {transform_indices = @transform_2, window_bounds = array<i64: 1, 1, 8, 256>}]} {
    %c0_i32 = arith.constant 0 : i32
    %0 = arith.cmpi eq, %arg2, %c0_i32 : i32
    %1 = arith.extui %0 : i1 to i32
    %c0_i32_0 = arith.constant 0 : i32
    %2 = arith.cmpi ne, %1, %c0_i32_0 : i32
    scf.if %2 {
      %cst_21 = arith.constant 0.000000e+00 : f32
      %41 = vector.broadcast %cst_21 : f32 to vector<1x1x8x256xf32>
      %c0_22 = arith.constant 0 : index
      %c0_23 = arith.constant 0 : index
      %c0_24 = arith.constant 0 : index
      %c0_25 = arith.constant 0 : index
      %42 = vector.load %arg5[%c0_22, %c0_23, %c0_24, %c0_25] : memref<1x1x8x256xf32, #tpu.memory_space<vmem>>, vector<1x1x8x256xf32>
      tpu.vector_store %arg5[%c0_22, %c0_23, %c0_24, %c0_25], %41 {strides = array<i32>} : memref<1x1x8x256xf32, #tpu.memory_space<vmem>>, vector<1x1x8x256xf32>,
    } else {
    }
    %c0_i32_1 = arith.constant 0 : i32
    %c256_i32 = arith.constant 256 : i32
    %3 = arith.muli %c0_i32_1, %c256_i32 : i32
    %4 = tpu.assume_multiple %3, 256 : i32
    %c0 = arith.constant 0 : index
    %c0_2 = arith.constant 0 : index
    %5 = arith.index_cast %4 : i32 to index
    %6 = vector.load %arg3[%c0, %c0_2, %5] : memref<1x4x256xf32, #tpu.memory_space<vmem>>, vector<1x4x256xf32>
    %7 = vector.shape_cast %6 : vector<1x4x256xf32> to vector<4x256xf32>
    %c0_3 = arith.constant 0 : index
    %c0_4 = arith.constant 0 : index
    %8 = arith.index_cast %4 : i32 to index
    %9 = vector.load %arg4[%c0_3, %c0_4, %8] : memref<1x1x256xi32, #tpu.memory_space<vmem>>, vector<1x1x256xi32>
    %10 = vector.shape_cast %9 : vector<1x1x256xi32> to vector<1x256xi32>
    %cst = arith.constant dense<0xFF800000> : vector<256xf32>
    %11 = vector.multi_reduction <maximumf>, %7, %cst [0] : vector<4x256xf32> to vector<256xf32>
    %12 = vector.shape_cast %11 : vector<256xf32> to vector<1x256xf32>
    %13 = vector.broadcast %12 : vector<1x256xf32> to vector<4x256xf32>
    %14 = arith.subf %7, %13 : vector<4x256xf32>
    %15 = math.exp %14 : vector<4x256xf32>
    %cst_5 = arith.constant dense<0.000000e+00> : vector<256xf32>
    %16 = vector.multi_reduction <add>, %15, %cst_5 [0] : vector<4x256xf32> to vector<256xf32>
    %17 = vector.shape_cast %16 : vector<256xf32> to vector<1x256xf32>
    %18 = tpu.reciprocal %17 : vector<1x256xf32> -> vector<1x256xf32>
    %19 = vector.broadcast %18 : vector<1x256xf32> to vector<4x256xf32>
    %20 = arith.mulf %15, %19 : vector<4x256xf32>
    %21 = tpu.iota {dimensions = array<i32: 0>} : vector<4x256xi32>
    %22 = vector.broadcast %10 : vector<1x256xi32> to vector<4x256xi32>
    %23 = arith.cmpi eq, %21, %22 : vector<4x256xi32>
    %24 = arith.extui %23 : vector<4x256xi1> to vector<4x256xi32>
    %25 = arith.sitofp %24 : vector<4x256xi32> to vector<4x256xf32>
    %26 = arith.mulf %20, %25 : vector<4x256xf32>
    %27 = arith.addf %20, %25 : vector<4x256xf32>
    %28 = arith.subf %27, %26 : vector<4x256xf32>
    %c0_6 = arith.constant 0 : index
    %c0_7 = arith.constant 0 : index
    %c0_8 = arith.constant 0 : index
    %c0_9 = arith.constant 0 : index
    %29 = vector.load %arg5[%c0_6, %c0_7, %c0_8, %c0_9] : memref<1x1x8x256xf32, #tpu.memory_space<vmem>>, vector<1x1x4x256xf32>
    %30 = vector.shape_cast %29 : vector<1x1x4x256xf32> to vector<4x256xf32>
    %31 = arith.addf %30, %26 : vector<4x256xf32>
    %c0_10 = arith.constant 0 : index
    %c0_11 = arith.constant 0 : index
    %c0_12 = arith.constant 0 : index
    %c0_13 = arith.constant 0 : index
    %32 = vector.load %arg5[%c0_10, %c0_11, %c0_12, %c0_13] : memref<1x1x8x256xf32, #tpu.memory_space<vmem>>, vector<1x1x4x256xf32>
    %33 = vector.shape_cast %32 : vector<1x1x4x256xf32> to vector<4x256xf32>
    %34 = vector.shape_cast %31 : vector<4x256xf32> to vector<1x1x4x256xf32>
    tpu.vector_store %arg5[%c0_10, %c0_11, %c0_12, %c0_13], %34 {strides = array<i32>} : memref<1x1x8x256xf32, #tpu.memory_space<vmem>>, vector<1x1x4x256xf32>,
    %c0_14 = arith.constant 0 : index
    %c0_15 = arith.constant 0 : index
    %c4 = arith.constant 4 : index
    %c0_16 = arith.constant 0 : index
    %35 = vector.load %arg5[%c0_14, %c0_15, %c4, %c0_16] : memref<1x1x8x256xf32, #tpu.memory_space<vmem>>, vector<1x1x4x256xf32>
    %36 = vector.shape_cast %35 : vector<1x1x4x256xf32> to vector<4x256xf32>
    %37 = arith.addf %36, %28 : vector<4x256xf32>
    %c0_17 = arith.constant 0 : index
    %c0_18 = arith.constant 0 : index
    %c4_19 = arith.constant 4 : index
    %c0_20 = arith.constant 0 : index
    %38 = vector.load %arg5[%c0_17, %c0_18, %c4_19, %c0_20] : memref<1x1x8x256xf32, #tpu.memory_space<vmem>>, vector<1x1x4x256xf32>
    %39 = vector.shape_cast %38 : vector<1x1x4x256xf32> to vector<4x256xf32>
    %40 = vector.shape_cast %37 : vector<4x256xf32> to vector<1x1x4x256xf32>
    tpu.vector_store %arg5[%c0_17, %c0_18, %c4_19, %c0_20], %40 {strides = array<i32>} : memref<1x1x8x256xf32, #tpu.memory_space<vmem>>, vector<1x1x4x256xf32>,
    %c1_i32 = arith.constant 1 : i32
    return
  }
  func.func @transform_0(%arg0: i32, %arg1: i32, %arg2: i32) -> (i32, i32, i32) {
    %c1_i32 = arith.constant 1 : i32
    %0 = arith.muli %arg0, %c1_i32 : i32
    %1 = arith.addi %0, %arg2 : i32
    %c0_i32 = arith.constant 0 : i32
    %2 = arith.minsi %1, %c0_i32 : i32
    %c0_i32_0 = arith.constant 0 : i32
    %c0_i32_1 = arith.constant 0 : i32
    return %arg1, %c0_i32_0, %2 : i32, i32, i32
  }
  func.func @transform_1(%arg0: i32, %arg1: i32, %arg2: i32) -> (i32, i32, i32) {
    %c1_i32 = arith.constant 1 : i32
    %0 = arith.muli %arg0, %c1_i32 : i32
    %1 = arith.addi %0, %arg2 : i32
    %c0_i32 = arith.constant 0 : i32
    %2 = arith.minsi %1, %c0_i32 : i32
    %c0_i32_0 = arith.constant 0 : i32
    %c0_i32_1 = arith.constant 0 : i32
    return %arg1, %c0_i32_0, %2 : i32, i32, i32
  }
  func.func @transform_2(%arg0: i32, %arg1: i32, %arg2: i32) -> (i32, i32, i32, i32) {
    %c0_i32 = arith.constant 0 : i32
    %c0_i32_0 = arith.constant 0 : i32
    %c0_i32_1 = arith.constant 0 : i32
    return %arg0, %arg1, %c0_i32, %c0_i32_0 : i32, i32, i32, i32
  }
}

</mosaic_0001>

<llo_original>
// kernel: miou_loss_from_labels.1
$region0: #{miou_loss_from_labels.1}
  #allocation0 [shape = 'u32[]', space=smem, size = 0x4, offset = 0x4, fixed_abs, tag = 'smem constant byte address 0x4 - core index']
  #allocation1 [shape = 'u32[144,128]{1,0:T(1,128)}', space=vmem, size = 0x12000, scoped, tag = 'internal scratch']
  %s0 = inlined_call_operand.vmem [shape: f32[2,4,256], index: 0, kind: input, shape index: {}]
  %s1 = inlined_call_operand.vmem [shape: s32[2,1,256], index: 1, kind: input, shape index: {}]
  %s2 = inlined_call_operand.vmem [shape: f32[1,2,8,256], index: 2, kind: output, shape index: {}]
  %s3 = sld [smem:[#allocation0]]
  $region45: #{miou_loss_from_labels.1} parent=0
    _
  %s5 = ssub.s32 1, %s3
  %s6 = scalar_select 0, %s5, %s3
  loop: start=0, step=1, limit=4
  $region2: #{miou_loss_from_labels.1} parent=0 // loop_pre_header
    _
  $region3: #{miou_loss_from_labels.1} parent=0 // loop_header
    %s8 = sphi 0, %s12
    %p9 = scmp.ge.s32.totalorder %s8, 4
    %s15 = sphi 0, %s34
    %s16 = sphi 0, %s30
    %s17 = sphi 0, %s26
    %s18 = sphi 0, %s15
    %s19 = sphi 0, %s16
    %s20 = sphi 0, %s17
    %s21 = sphi 0, %s18
    %s22 = sphi 0, %s19
    %s23 = sphi 0, %s20
    %s45 = sphi 0, %s47
    %s48 = sphi 0, %s45
    %s49 = sphi 0, %s48
    %s65 = sphi 0, %s49
    %s79 = sphi 0, %s81
    %s82 = sphi 0, %s79
    %s83 = sphi 0, %s82
    %s99 = sphi 0, %s83
    %s107 = sphi 0, %s109
    %s110 = sphi 0, %s107
    %s111 = sphi 0, %s110
    %s127 = sphi 0, %s111
  $region4: #{miou_loss_from_labels.1} parent=0 // loop_header_branch
    %11 = sbr.rel (%p9) target = $region8
  $region5: #{miou_loss_from_labels.1} parent=0 // loop_body
    %s13 = ssub.s32 %s8, 1
    %s14 = ssub.s32 %s8, 2
    %s24 = sadd.s32 1, %s17
    %p25 = scmp.ge.s32.totalorder %s24, 1
    %s26 = scalar_select %p25, 0, %s24
    %s27 = sadd.s32 1, %s16
    %s28 = scalar_select %p25, %s27, %s16
    %p29 = scmp.ge.s32.totalorder %s28, 2
    %s30 = scalar_select %p29, 0, %s28
    %s31 = sadd.s32 1, %s15
    %s32 = scalar_select %p29, %s31, %s15
    %p33 = scmp.ge.s32.totalorder %s32, 1
    %s34 = scalar_select %p33, 0, %s32
    %s35 = sadd.s32 %s15, %s17
    %p36 = scmp.lt.s32.totalorder %s35, 0
    %s37 = scalar_select %p36, %s35, 0
    %s38 = sadd.s32 %s34, %s26
    %p39 = scmp.lt.s32.totalorder %s38, 0
    %s40 = scalar_select %p39, %s38, 0
    %s41 = ssub.s32 %s16, %s30
    %s42 = ssub.s32 %s37, %s40
    %s43 = sor.u32 %s41, %s42
    %p44 = scmp.eq.s32.totalorder %s43, 0
    %s46 = sadd.s32 %s45, 1
    %s47 = scalar_select %p44, %s45, %s46
    %p50 = pneg %p44
    %p51 = scmp.eq.s32.totalorder %s8, 1
    %p52 = por %p50, %p51
    %p53 = scmp.ne.s32.totalorder %s45, %s48
    %p54 = scmp.eq.s32.totalorder %s8, 0
    %p55 = por %p53, %p54
    %p56 = scmp.ne.s32.totalorder %s45, %s48
    %p57 = scmp.eq.s32.totalorder %s13, 1
    %p58 = por %p56, %p57
    %p59 = scmp.ne.s32.totalorder %s48, %s49
    %p60 = scmp.eq.s32.totalorder %s13, 0
    %p61 = por %p59, %p60
    %p62 = scmp.ne.s32.totalorder %s48, %s49
    %p63 = scmp.eq.s32.totalorder %s14, 1
    %p64 = por %p62, %p63
    %p66 = scmp.ne.s32.totalorder %s49, %s65
    %p67 = scmp.eq.s32.totalorder %s14, 0
    %p68 = por %p66, %p67
    %s69 = sadd.s32 %s15, %s17
    %p70 = scmp.lt.s32.totalorder %s69, 0
    %s71 = scalar_select %p70, %s69, 0
    %s72 = sadd.s32 %s34, %s26
    %p73 = scmp.lt.s32.totalorder %s72, 0
    %s74 = scalar_select %p73, %s72, 0
    %s75 = ssub.s32 %s16, %s30
    %s76 = ssub.s32 %s71, %s74
    %s77 = sor.u32 %s75, %s76
    %p78 = scmp.eq.s32.totalorder %s77, 0
    %s80 = sadd.s32 %s79, 1
    %s81 = scalar_select %p78, %s79, %s80
    %p84 = pneg %p78
    %p85 = scmp.eq.s32.totalorder %s8, 1
    %p86 = por %p84, %p85
    %p87 = scmp.ne.s32.totalorder %s79, %s82
    %p88 = scmp.eq.s32.totalorder %s8, 0
    %p89 = por %p87, %p88
    %p90 = scmp.ne.s32.totalorder %s79, %s82
    %p91 = scmp.eq.s32.totalorder %s13, 1
    %p92 = por %p90, %p91
    %p93 = scmp.ne.s32.totalorder %s82, %s83
    %p94 = scmp.eq.s32.totalorder %s13, 0
    %p95 = por %p93, %p94
    %p96 = scmp.ne.s32.totalorder %s82, %s83
    %p97 = scmp.eq.s32.totalorder %s14, 1
    %p98 = por %p96, %p97
    %p100 = scmp.ne.s32.totalorder %s83, %s99
    %p101 = scmp.eq.s32.totalorder %s14, 0
    %p102 = por %p100, %p101
    %s103 = ssub.s32 %s15, %s34
    %s104 = ssub.s32 %s16, %s30
    %s105 = sor.u32 %s103, %s104
    %p106 = scmp.eq.s32.totalorder %s105, 0
    %s108 = sadd.s32 %s107, 1
    %s109 = scalar_select %p106, %s107, %s108
    %p112 = pneg %p106
    %p113 = scmp.eq.s32.totalorder %s8, 1
    %p114 = por %p112, %p113
    %p115 = scmp.ne.s32.totalorder %s107, %s110
    %p116 = scmp.eq.s32.totalorder %s8, 0
    %p117 = por %p115, %p116
    %p118 = scmp.ne.s32.totalorder %s107, %s110
    %p119 = scmp.eq.s32.totalorder %s13, 1
    %p120 = por %p118, %p119
    %p121 = scmp.ne.s32.totalorder %s110, %s111
    %p122 = scmp.eq.s32.totalorder %s13, 0
    %p123 = por %p121, %p122
    %p124 = scmp.ne.s32.totalorder %s110, %s111
    %p125 = scmp.eq.s32.totalorder %s14, 1
    %p126 = por %p124, %p125
    %p128 = scmp.ne.s32.totalorder %s111, %s127
    %p129 = scmp.eq.s32.totalorder %s14, 0
    %p130 = por %p128, %p129
    %p131 = scmp.le.s32.totalorder 1, %s8
    %p132 = scmp.lt.s32.totalorder %s8, 3
    %p133 = pnand %p131, %p132
    %p134 = pneg %p133
    // Predicated region
    $region9: #{miou_loss_from_labels.1} parent=5 // pred_check
      _
    $region10: #{miou_loss_from_labels.1} parent=5 // pred_check_branch
      %136 = sbr.rel (%p133) target = $region12
    $region11: #{miou_loss_from_labels.1} parent=5 // pred_region
      %s137 = ssub.s32 %s8, 1
    $region12: #{miou_loss_from_labels.1} parent=5 // pred_fallthru
      _
    %p138 = scmp.lt.s32.totalorder %s8, 2
    // Predicated region
    $region13: #{miou_loss_from_labels.1} parent=5 // pred_check
      %p139 = pneg %p138
    $region14: #{miou_loss_from_labels.1} parent=5 // pred_check_branch
      %141 = sbr.rel (%p139) target = $region16
    $region15: #{miou_loss_from_labels.1} parent=5 // pred_region
      // Predicated region
      $region17: #{miou_loss_from_labels.1} parent=15 // pred_check
        %p142 = pneg %p55
      $region18: #{miou_loss_from_labels.1} parent=15 // pred_check_branch
        %144 = sbr.rel (%p142) target = $region20
      $region19: #{miou_loss_from_labels.1} parent=15 // pred_region
        %s145 = sadd.s32 %s15, %s17
        %p146 = scmp.lt.s32.totalorder %s145, 0
        %s147 = scalar_select %p146, %s145, 0
        %s148 = smul.u32 2, %s147
        %p149 = scmp.lt.s32.totalorder %s16, 1
        %s150 = scalar_select %p149, %s16, 1
        %p151 = scmp.lt.s32.totalorder %s148, 1
        %s152 = scalar_select %p151, %s148, 1
        %s153 = smul.addr %s150, 2
        %s154 = sadd.s32 %s152, %s153
        %s155 = smul.addr %s154, 4
        %s156 = scalar_lea.vmem %s0, %s155
        %s157 = sadd.s32 %s15, %s17
        %p158 = scmp.lt.s32.totalorder %s157, 0
        %s159 = scalar_select %p158, %s157, 0
        %s160 = smul.u32 2, %s159
      $region20: #{miou_loss_from_labels.1} parent=15 // pred_fallthru
        _
      // Predicated region
      $region21: #{miou_loss_from_labels.1} parent=15 // pred_check
        %p161 = pneg %p89
      $region22: #{miou_loss_from_labels.1} parent=15 // pred_check_branch
        %163 = sbr.rel (%p161) target = $region24
      $region23: #{miou_loss_from_labels.1} parent=15 // pred_region
        %s164 = sadd.s32 %s15, %s17
        %p165 = scmp.lt.s32.totalorder %s164, 0
        %s166 = scalar_select %p165, %s164, 0
        %s167 = smul.u32 2, %s166
        %p168 = scmp.lt.s32.totalorder %s16, 1
        %s169 = scalar_select %p168, %s16, 1
        %p170 = scmp.lt.s32.totalorder %s167, 1
        %s171 = scalar_select %p170, %s167, 1
        %s172 = smul.addr %s169, 2
        %s173 = sadd.s32 %s171, %s172
        %s174 = scalar_lea.vmem %s1, %s173
        %s175 = sadd.s32 %s15, %s17
        %p176 = scmp.lt.s32.totalorder %s175, 0
        %s177 = scalar_select %p176, %s175, 0
        %s178 = smul.u32 2, %s177
      $region24: #{miou_loss_from_labels.1} parent=15 // pred_fallthru
        _
    $region16: #{miou_loss_from_labels.1} parent=5 // pred_fallthru
      _
    %p179 = scmp.le.s32.totalorder 1, %s8
    %p180 = scmp.lt.s32.totalorder %s8, 3
    %p181 = pnand %p179, %p180
    %p182 = pneg %p181
    // Predicated region
    $region25: #{miou_loss_from_labels.1} parent=5 // pred_check
      _
    $region26: #{miou_loss_from_labels.1} parent=5 // pred_check_branch
      %184 = sbr.rel (%p181) target = $region28
    $region27: #{miou_loss_from_labels.1} parent=5 // pred_region
      %s185 = ssub.s32 %s8, 1
      %s186 = sadd.s32 %s18, %s20
      %p187 = scmp.lt.s32.totalorder %s186, 0
      %s188 = scalar_select %p187, %s186, 0
      %s189 = smul.u32 2, %s188
      %p190 = scmp.lt.s32.totalorder %s19, 1
      %s191 = scalar_select %p190, %s19, 1
      %p192 = scmp.lt.s32.totalorder %s189, 1
      %s193 = scalar_select %p192, %s189, 1
      %s194 = smul.addr %s191, 2
      %s195 = sadd.s32 %s193, %s194
      %s196 = smul.addr %s195, 4
      %s197 = scalar_lea.vmem %s0, %s196
      %p198 = pneg %p61
      %p199 = pneg %p58
      %s200 = sadd.s32 %s18, %s20
      %p201 = scmp.lt.s32.totalorder %s200, 0
      %s202 = scalar_select %p201, %s200, 0
      %s203 = smul.u32 2, %s202
      %p204 = scmp.lt.s32.totalorder %s19, 1
      %s205 = scalar_select %p204, %s19, 1
      %p206 = scmp.lt.s32.totalorder %s203, 1
      %s207 = scalar_select %p206, %s203, 1
      %s208 = smul.addr %s205, 2
      %s209 = sadd.s32 %s207, %s208
      %s210 = scalar_lea.vmem %s1, %s209
      %p211 = pneg %p95
      %p212 = pneg %p92
      %p213 = pneg %p123
      %p214 = pneg %p120
      %p215 = scmp.lt.s32.totalorder %s18, 0
      %s216 = scalar_select %p215, %s18, 0
      %p217 = scmp.lt.s32.totalorder %s19, 1
      %s218 = scalar_select %p217, %s19, 1
      %s219 = smul.addr %s218, 2
      %s220 = smul.addr %s216, 4
      %s221 = sadd.s32 %s219, %s220
      %s222 = smul.addr %s221, 8
      %s223 = scalar_lea.vmem %s2, %s222
      %s224 = sadd.s32 %s18, %s20
      %p225 = scmp.lt.s32.totalorder %s224, 0
      %s226 = scalar_select %p225, %s224, 0
      %s227 = smul.u32 2, %s226
      %p228 = scmp.lt.s32.totalorder %s19, 1
      %s229 = scalar_select %p228, %s19, 1
      %p230 = scmp.lt.s32.totalorder %s227, 1
      %s231 = scalar_select %p230, %s227, 1
      %s232 = smul.addr %s229, 2
      %s233 = sadd.s32 %s231, %s232
      %s234 = smul.addr %s233, 4
      %s235 = scalar_lea.vmem %s0, %s234
      %s236 = sadd.s32 %s18, %s20
      %p237 = scmp.lt.s32.totalorder %s236, 0
      %s238 = scalar_select %p237, %s236, 0
      %s239 = smul.u32 2, %s238
      %s240 = sadd.s32 %s18, %s20
      %p241 = scmp.lt.s32.totalorder %s240, 0
      %s242 = scalar_select %p241, %s240, 0
      %s243 = smul.u32 2, %s242
      %p244 = scmp.lt.s32.totalorder %s19, 1
      %s245 = scalar_select %p244, %s19, 1
      %p246 = scmp.lt.s32.totalorder %s243, 1
      %s247 = scalar_select %p246, %s243, 1
      %s248 = smul.addr %s245, 2
      %s249 = sadd.s32 %s247, %s248
      %s250 = scalar_lea.vmem %s1, %s249
      %s251 = sadd.s32 %s18, %s20
      %p252 = scmp.lt.s32.totalorder %s251, 0
      %s253 = scalar_select %p252, %s251, 0
      %s254 = smul.u32 2, %s253
      %p255 = scmp.lt.s32.totalorder %s18, 0
      %s256 = scalar_select %p255, %s18, 0
      %p257 = scmp.lt.s32.totalorder %s19, 1
      %s258 = scalar_select %p257, %s19, 1
      %s259 = smul.addr %s258, 2
      %s260 = smul.addr %s256, 4
      %s261 = sadd.s32 %s259, %s260
      %s262 = smul.addr %s261, 8
      %s263 = scalar_lea.vmem %s2, %s262
      %p264 = scmp.eq.s32.totalorder %s20, 0
      // Predicated region
      $region29: #{miou_loss_from_labels.1} parent=27 // pred_check
        %p265 = pneg %p264
      $region30: #{miou_loss_from_labels.1} parent=27 // pred_check_branch
        %267 = sbr.rel (%p265) target = $region32
      $region31: #{miou_loss_from_labels.1} parent=27 // pred_region
        %268 = vst [vmem:[%s263] sm:$0xff] 0.0
        %269 = vst [vmem:[%s263 + $0x8] sm:$0xff] 0.0
      $region32: #{miou_loss_from_labels.1} parent=27 // pred_fallthru
        _
      %v270 = vld [vmem:[%s235] sm:$0xff]
      %v271 = vld [vmem:[%s250] sm:$0x3]
      %v273 = vcombine.high %v270, %v270
      %vm275 = vcmask 1043456
      %v276 = vsel %vm275, %v270, -inf
      %v277 = vrot.slane %v276, 4
      %v278 = vmax.f32 %v276, %v277
      %v279 = vrot.slane %v278, 2
      %v280 = vmax.f32 %v278, %v279
      %v281 = vrot.slane %v280, 1
      %v282 = vmax.f32 %v280, %v281
      %v283 = vsel %vm275, %v273, -inf
      %v284 = vrot.slane %v283, 4
      %v285 = vmax.f32 %v283, %v284
      %v286 = vrot.slane %v285, 2
      %v287 = vmax.f32 %v285, %v286
      %v288 = vrot.slane %v287, 1
      %v289 = vmax.f32 %v287, %v288
      %v292 = vcombine.low %v282, %v289
      %v294 = vsub.f32 %v270, %v292
      %v295 = vmul.f32 %v294, 1.442695
      %v296 = vpow.pop %v295
      %v298 = vcombine.high %v296, %v296
      %v300 = vsel %vm275, %v296, 0.0
      %v301 = vrot.slane %v300, 4
      %v302 = vadd.f32 %v300, %v301
      %v303 = vrot.slane %v302, 2
      %v304 = vadd.f32 %v302, %v303
      %v305 = vrot.slane %v304, 1
      %v306 = vadd.f32 %v304, %v305
      %v307 = vsel %vm275, %v298, 0.0
      %v308 = vrot.slane %v307, 4
      %v309 = vadd.f32 %v307, %v308
      %v310 = vrot.slane %v309, 2
      %v311 = vadd.f32 %v309, %v310
      %v312 = vrot.slane %v311, 1
      %v313 = vadd.f32 %v311, %v312
      %v314 = vrcp.pop %v306
      %v315 = vrcp.pop %v313
      %v318 = vcombine.low %v314, %v315
      %v320 = vmul.f32 %v296, %v318
      %v321 = vlaneseq
      %v322 = vshrl.u32 %v321, 7
      %v323 = vlaneseq
      %v324 = vshrl.u32 %v323, 7
      %v325 = vsub.s32 0, %v324
      %v326 = vrot.slane %v271, %v325
      %v327 = vlaneseq
      %v328 = vshrl.u32 %v327, 7
      %v329 = vsub.s32 1, %v328
      %v330 = vrot.slane %v271, %v329
      %vm331 = vcmp.eq.s32.totalorder %v322, %v326
      %vm332 = vcmp.eq.s32.totalorder %v322, %v330
      %v333 = vsel %vm331, 1, 0
      %v334 = vsel %vm332, 1, 0
      %v335 = vcvt.s32.f32 %v333
      %v336 = vcvt.s32.f32 %v334
      %v339 = vcombine.low %v335, %v336
      %v341 = vmul.f32 %v320, %v339
      %v342 = vadd.f32 %v320, %v339
      %v343 = vsub.f32 %v342, %v341
      %v344 = vld [vmem:[%s263] sm:$0xf]
      %v345 = vld [vmem:[%s263 + $0x8] sm:$0xf]
      %v347 = vcombine.high %v341, %v341
      %v349 = vadd.f32 %v344, %v341
      %v350 = vadd.f32 %v345, %v347
      %351 = vst [vmem:[%s263] sm:$0xf] %v349
      %352 = vst [vmem:[%s263 + $0x8] sm:$0xf] %v350
      %v353 = vld [vmem:[%s263] sm:$0xf0]
      %v354 = vld [vmem:[%s263 + $0x8] sm:$0xf0]
      %v356 = vcombine.low %v343, %v343
      %v358 = vadd.f32 %v353, %v356
      %v359 = vadd.f32 %v354, %v343
      %360 = vst [vmem:[%s263] sm:$0xf0] %v358
      %361 = vst [vmem:[%s263 + $0x8] sm:$0xf0] %v359
      %p362 = scmp.lt.s32.totalorder %s18, 0
      %s363 = scalar_select %p362, %s18, 0
      %p364 = scmp.lt.s32.totalorder %s19, 1
      %s365 = scalar_select %p364, %s19, 1
      %s366 = smul.addr %s365, 2
      %s367 = smul.addr %s363, 4
      %s368 = sadd.s32 %s366, %s367
      %s369 = smul.addr %s368, 8
      %s370 = scalar_lea.vmem %s2, %s369
      // Predicated region
      $region33: #{miou_loss_from_labels.1} parent=27 // pred_check
        %p371 = pneg %p120
      $region34: #{miou_loss_from_labels.1} parent=27 // pred_check_branch
        %373 = sbr.rel (%p371) target = $region36
      $region35: #{miou_loss_from_labels.1} parent=27 // pred_region
        _
      $region36: #{miou_loss_from_labels.1} parent=27 // pred_fallthru
        _
    $region28: #{miou_loss_from_labels.1} parent=5 // pred_fallthru
      _
    %p374 = scmp.le.s32.totalorder 2, %s8
    // Predicated region
    $region37: #{miou_loss_from_labels.1} parent=5 // pred_check
      %p375 = pneg %p374
    $region38: #{miou_loss_from_labels.1} parent=5 // pred_check_branch
      %377 = sbr.rel (%p375) target = $region40
    $region39: #{miou_loss_from_labels.1} parent=5 // pred_region
      %s378 = ssub.s32 %s8, 2
      // Predicated region
      $region41: #{miou_loss_from_labels.1} parent=39 // pred_check
        %p379 = pneg %p126
      $region42: #{miou_loss_from_labels.1} parent=39 // pred_check_branch
        %381 = sbr.rel (%p379) target = $region44
      $region43: #{miou_loss_from_labels.1} parent=39 // pred_region
        %p382 = scmp.lt.s32.totalorder %s21, 0
        %s383 = scalar_select %p382, %s21, 0
        %p384 = scmp.lt.s32.totalorder %s22, 1
        %s385 = scalar_select %p384, %s22, 1
        %s386 = smul.addr %s385, 2
        %s387 = smul.addr %s383, 4
        %s388 = sadd.s32 %s386, %s387
        %s389 = smul.addr %s388, 8
        %s390 = scalar_lea.vmem %s2, %s389
      $region44: #{miou_loss_from_labels.1} parent=39 // pred_fallthru
        _
    $region40: #{miou_loss_from_labels.1} parent=5 // pred_fallthru
      _
  $region6: #{miou_loss_from_labels.1} parent=0 // loop_footer
    %s12 = sadd.s32 1, %s8
  $region7: #{miou_loss_from_labels.1} parent=0 // loop_footer_branch
    %7 = sbr.rel target = $region3
  $region8: #{miou_loss_from_labels.1} parent=0 // loop_exit
    _

</llo_original>
